<compile_context>
chip_gen: v7x
topology: tpu7x:2x2x1
jax: 0.10.0
libtpu: 0.0.40
codegen_flags: <defaults>
</compile_context>

<pallas_src>
import jax
import jax.numpy as jnp
from jax.experimental import pallas as pl
from jax.experimental.pallas import tpu as pltpu


def _pick_tile_n(n: int) -> int:
    """Rows per grid step: up to 128 (good MXU LHS tiles) but keep >= 8 steps."""
    tile = 128
    while tile > 8 and n < 8 * tile:
        tile //= 2
    return tile


def _vmem_limit_bytes() -> int:
    """~3/4 of physical VMEM, capped at 100 MiB (96 MiB v5e/v6e, 48 MiB v7x)."""
    try:
        cap = pltpu.get_tpu_info().vmem_capacity_bytes
    except Exception:  # conservative fallback if the query is unavailable
        cap = 64 * 1024 * 1024
    return min(100 * 1024 * 1024, (cap * 3) // 4)


# ----------------------------------------------------------------------------
# Kernel: one transformer-encoder layer, CLS-row output, tile_n sequences/step.
# ----------------------------------------------------------------------------
def encoder_cls_kernel(x_ref, x0_ref, len_ref, wqk_ref, wvo_ref, w1_ref,
                       w2_ref, cls_ref):
    tile_n, s, h = x_ref.shape
    scale = 1.0 / float(h) ** 0.5

    x = x_ref[...]                       # (T, S, H) bf16 token embeddings
    x0 = x0_ref[...]                     # (T, H)    bf16 CLS tokens
    lens = len_ref[...]                  # (T, 1)    int32 valid-key counts

    # Folded CLS query: qw = x0 @ (Wq Wk^T) -> one (T,H)x(H,H) bf16 MXU matmul.
    qw = jnp.dot(x0, wqk_ref[...], preferred_element_type=jnp.float32)   # (T,H)

    # Attention scores (T, S) without a K projection: contract H against the
    # raw embeddings with a VPU multiply + lane reduce (f32 accumulate).
    scores = jnp.sum(qw[:, None, :] * x, axis=-1) * scale                # (T,S)
    key_idx = jax.lax.broadcasted_iota(jnp.int32, (tile_n, s), 1)
    scores = jnp.where(key_idx < lens, scores, jnp.float32(-1e9))

    smax = jnp.max(scores, axis=-1, keepdims=True)
    p = jnp.exp(scores - smax)
    p = p * pl.reciprocal(jnp.sum(p, axis=-1, keepdims=True), approx=True)

    # Pool the raw embeddings with the softmax weights, then a single folded
    # (Wv Wo) projection -> no V projection of all S tokens, no f32 (T,S,H) k/v.
    pooled = jnp.sum(p[:, :, None] * x, axis=1)                          # (T,H)
    h_cls = x0.astype(jnp.float32) + jnp.dot(
        pooled.astype(jnp.bfloat16), wvo_ref[...],
        preferred_element_type=jnp.float32)                              # (T,H)

    # FFN + residual, CLS rows only.
    f_act = jnp.maximum(
        jnp.dot(h_cls.astype(jnp.bfloat16), w1_ref[...],
                preferred_element_type=jnp.float32), 0.0)                # (T,F)
    out = h_cls + jnp.dot(f_act.astype(jnp.bfloat16), w2_ref[...],
                          preferred_element_type=jnp.float32)            # (T,H)

    cls_ref[...] = out                   # lane-dense (T, H) slab, unmasked vst


def run_encoder(x, x0, lens, wqk, wvo, w1, w2, *, tile_n):
    """x: (N,S,H) bf16, x0: (N,H) bf16, lens: (N,1) i32 -> (N,H) f32 CLS."""
    n, s, h = x.shape
    f = w1.shape[1]
    const = lambda i: (0, 0)
    # Constant-index weight blocks: single-buffered (double-buffering a block
    # whose index never changes only wastes VMEM - matters at production H/F
    # on v7x's 64 MiB VMEM).
    weight_spec = lambda shape: pl.BlockSpec(shape, const,
                                             pipeline_mode=pl.Buffered(1))
    return pl.pallas_call(
        encoder_cls_kernel,
        out_shape=jax.ShapeDtypeStruct((n, h), jnp.float32),
        grid_spec=pltpu.PrefetchScalarGridSpec(
            num_scalar_prefetch=0,
            grid=(n // tile_n,),
            in_specs=[
                # (T,S,H) embeddings: only elementwise/reduce ops touch this
                # block (no in-kernel reshape or strided CLS slice).  v5e note:
                # raise its depth (pl.Buffered(3)) if the DMA is exposed.
                pl.BlockSpec((tile_n, s, h), lambda i: (i, 0, 0)),
                pl.BlockSpec((tile_n, h), lambda i: (i, 0)),   # CLS rows
                pl.BlockSpec((tile_n, 1), lambda i: (i, 0)),   # lengths
                weight_spec((h, h)),     # Wq @ Wk^T
                weight_spec((h, h)),     # Wv @ Wo
                weight_spec((h, f)),     # W1
                weight_spec((f, h)),     # W2
            ],
            out_specs=pl.BlockSpec((tile_n, h), lambda i: (i, 0)),
        ),
        compiler_params=pltpu.CompilerParams(
            dimension_semantics=("parallel",),
            vmem_limit_bytes=_vmem_limit_bytes()),
    )(x, x0, lens, wqk, wvo, w1, w2)


# ----------------------------------------------------------------------------
# Full forward (embedding lookups, review-mean and concat are XLA glue).
# ----------------------------------------------------------------------------
@jax.jit
def tour_embedding_forward(location, input_ids, attention_mask, params):
    b, r, s = input_ids.shape
    n = b * r

    # Token embedding lookup (XLA glue), bf16 activations for the MXU.
    # TODO(synk): fuse this gather into the kernel via scalar-prefetched ids +
    #             manual DMA gather to skip one HBM round trip of (N,S,H).
    flat_ids = input_ids.reshape(n, s)
    x = jnp.take(params["tok_table"], flat_ids, axis=0).astype(jnp.bfloat16)
    x0 = x[:, 0, :]                                          # (N, H) CLS rows
    # Per-sequence valid-key counts instead of an (N,S) f32 mask (masks are
    # contiguous prefixes, as produced by standard right-padding tokenizers).
    lens = jnp.sum(attention_mask.reshape(n, s) > 0.0,
                   axis=-1, dtype=jnp.int32)[:, None]        # (N, 1) int32

    # Fold the CLS-only attention weights once per call (exact same algebra:
    # q k^T = x0 Wq Wk^T x^T ;  (p V) Wo = (p X) (Wv Wo)).
    wqk = jnp.dot(params["wq"], params["wk"].T).astype(jnp.bfloat16)
    wvo = jnp.dot(params["wv"], params["wo"]).astype(jnp.bfloat16)
    w1 = params["w1"].astype(jnp.bfloat16)
    w2 = params["w2"].astype(jnp.bfloat16)

    # Pad N up to a multiple of the row tile (padded rows produce finite junk
    # that is sliced off before pooling).
    tile_n = _pick_tile_n(n)
    n_pad = pl.cdiv(n, tile_n) * tile_n
    if n_pad != n:
        x = jnp.pad(x, ((0, n_pad - n), (0, 0), (0, 0)))
        x0 = jnp.pad(x0, ((0, n_pad - n), (0, 0)))
        lens = jnp.pad(lens, ((0, n_pad - n), (0, 0)), constant_values=s)

    cls = run_encoder(x, x0, lens, wqk, wvo, w1, w2, tile_n=tile_n)
    cls = cls[:n].reshape(b, r, -1)                          # (B, R, H)

    # mean over review_num + concat([loc_emb, review_mean], dim=1) — trivial
    # lane-misaligned work, cheaper as plain XLA than a dedicated pallas_call.
    pooled = jnp.mean(cls, axis=1)                           # (B, H)
    loc_emb = jnp.take(params["loc_table"], location, axis=0).astype(jnp.float32)
    return jnp.concatenate([loc_emb, pooled], axis=1)        # (B, LOC_DIM + H)


def reference_forward(location, input_ids, attention_mask, params):
    """Pure-JAX f32 reference using the un-folded encoder math."""
    b, r, s = input_ids.shape
    n = b * r
    x = params["tok_table"][input_ids.reshape(n, s)]         # (N, S, H) f32
    mask = attention_mask.reshape(n, s)
    x0 = x[:, 0, :]
    h = x.shape[-1]
    q = x0 @ params["wq"]
    k = x @ params["wk"]
    v = x @ params["wv"]
    scores = jnp.einsum("nh,nsh->ns", q, k) / jnp.sqrt(jnp.float32(h))
    scores = jnp.where(mask > 0.0, scores, -1e9)
    p = jax.nn.softmax(scores, axis=-1)
    attn = jnp.einsum("ns,nsh->nh", p, v)
    h_cls = x0 + attn @ params["wo"]
    out = h_cls + jnp.maximum(h_cls @ params["w1"], 0.0) @ params["w2"]
    pooled = jnp.mean(out.reshape(b, r, -1), axis=1)
    loc_emb = params["loc_table"][location]
    return jnp.concatenate([loc_emb, pooled], axis=1)


def init_params(key, vocab, num_loc, hidden, ffn, loc_dim):
    ks = jax.random.split(key, 8)
    std = 0.02
    return {
        "tok_table": std * jax.random.normal(ks[0], (vocab, hidden), jnp.float32),
        "loc_table": std * jax.random.normal(ks[1], (num_loc, loc_dim), jnp.float32),
        "wq": std * jax.random.normal(ks[2], (hidden, hidden), jnp.float32),
        "wk": std * jax.random.normal(ks[3], (hidden, hidden), jnp.float32),
        "wv": std * jax.random.normal(ks[4], (hidden, hidden), jnp.float32),
        "wo": std * jax.random.normal(ks[5], (hidden, hidden), jnp.float32),
        "w1": std * jax.random.normal(ks[6], (hidden, ffn), jnp.float32),
        "w2": std * jax.random.normal(ks[7], (ffn, hidden), jnp.float32),
    }


if __name__ == "__main__":
    B, R, S = 8, 8, 8            # batch, review_num, seq_len  (N = 64 -> grid 8)
    HIDDEN, FFN = 128, 256       # lane-dense hidden size (multiple of 128)
    LOC_DIM, NUM_LOC, VOCAB = 64, 10, 50

    key = jax.random.PRNGKey(0)
    k_param, k_loc, k_ids, k_len = jax.random.split(key, 4)

    params = init_params(k_param, VOCAB, NUM_LOC, HIDDEN, FFN, LOC_DIM)

    location = jax.random.randint(k_loc, (B,), 0, NUM_LOC, dtype=jnp.int32)
    input_ids = jax.random.randint(k_ids, (B, R, S), 0, VOCAB, dtype=jnp.int32)
    lengths = jax.random.randint(k_len, (B, R), 4, S + 1, dtype=jnp.int32)
    attention_mask = (jnp.arange(S)[None, None, :]
                      < lengths[..., None]).astype(jnp.float32)

    out = tour_embedding_forward(location, input_ids, attention_mask, params)
    out = jax.block_until_ready(out)

    assert out.shape == (B, LOC_DIM + HIDDEN), out.shape
    assert bool(jnp.all(jnp.isfinite(out)))

    # Tolerance-test against a pure-JAX f32 reference (bounds the deviation
    # from bf16 MXU operands + the EUP approx softmax reciprocal).
    ref = reference_forward(location, input_ids, attention_mask, params)
    max_err = float(jnp.max(jnp.abs(out - ref)))
    assert bool(jnp.allclose(out, ref, atol=2e-3, rtol=2e-2)), max_err

    print("KERNEL_OK")
</pallas_src>

<mosaic_0001>
module attributes {stable_mosaic.version = 11 : i64} {
  func.func @encoder_cls_kernel(%arg0: i32, %arg1: memref<8x8x128xbf16, #tpu.memory_space<vmem>>, %arg2: memref<8x128xbf16, #tpu.memory_space<vmem>>, %arg3: memref<8x1xi32, #tpu.memory_space<vmem>>, %arg4: memref<128x128xbf16, #tpu.memory_space<vmem>>, %arg5: memref<128x128xbf16, #tpu.memory_space<vmem>>, %arg6: memref<128x256xbf16, #tpu.memory_space<vmem>>, %arg7: memref<256x128xbf16, #tpu.memory_space<vmem>>, %arg8: memref<8x128xf32, #tpu.memory_space<vmem>>) attributes {dimension_semantics = [#tpu.dimension_semantics<parallel>], iteration_bounds = array<i64: 8>, scalar_prefetch = 0 : i64, scratch_operands = 0 : i64, tpu.core_type = #tpu.core_type<tc>, window_params = [{transform_indices = @transform_0, window_bounds = array<i64: 8, 8, 128>}, {transform_indices = @transform_1, window_bounds = array<i64: 8, 128>}, {transform_indices = @transform_2, window_bounds = array<i64: 8, 1>}, {pipeline_mode = #tpu.pipeline_mode<synchronous>, transform_indices = @transform_3, window_bounds = array<i64: 128, 128>}, {pipeline_mode = #tpu.pipeline_mode<synchronous>, transform_indices = @transform_4, window_bounds = array<i64: 128, 128>}, {pipeline_mode = #tpu.pipeline_mode<synchronous>, transform_indices = @transform_5, window_bounds = array<i64: 128, 256>}, {pipeline_mode = #tpu.pipeline_mode<synchronous>, transform_indices = @transform_6, window_bounds = array<i64: 256, 128>}, {transform_indices = @transform_7, window_bounds = array<i64: 8, 128>}]} {
    %c0 = arith.constant 0 : index
    %c0_0 = arith.constant 0 : index
    %c0_1 = arith.constant 0 : index
    %0 = vector.load %arg1[%c0, %c0_0, %c0_1] : memref<8x8x128xbf16, #tpu.memory_space<vmem>>, vector<8x8x128xbf16>
    %c0_2 = arith.constant 0 : index
    %c0_3 = arith.constant 0 : index
    %1 = vector.load %arg2[%c0_2, %c0_3] : memref<8x128xbf16, #tpu.memory_space<vmem>>, vector<8x128xbf16>
    %c0_4 = arith.constant 0 : index
    %c0_5 = arith.constant 0 : index
    %2 = vector.load %arg3[%c0_4, %c0_5] : memref<8x1xi32, #tpu.memory_space<vmem>>, vector<8x1xi32>
    %c0_6 = arith.constant 0 : index
    %c0_7 = arith.constant 0 : index
    %3 = vector.load %arg4[%c0_6, %c0_7] : memref<128x128xbf16, #tpu.memory_space<vmem>>, vector<128x128xbf16>
    %cst = arith.constant dense<0.000000e+00> : vector<8x128xf32>
    %4 = tpu.matmul %1, %3, %cst {dimension_numbers = #tpu.dot_dimension_numbers<[1], [0], [0], [1], [0, 0, 1, 1], [], []>} : vector<8x128xbf16>, vector<128x128xbf16>, vector<8x128xf32> -> vector<8x128xf32>
    %5 = vector.shape_cast %4 : vector<8x128xf32> to vector<8x1x128xf32>
    %6 = arith.extf %0 : vector<8x8x128xbf16> to vector<8x8x128xf32>
    %7 = vector.broadcast %5 : vector<8x1x128xf32> to vector<8x8x128xf32>
    %8 = arith.mulf %7, %6 : vector<8x8x128xf32>
    %cst_8 = arith.constant dense<0.000000e+00> : vector<8x8xf32>
    %9 = vector.multi_reduction <add>, %8, %cst_8 [2] : vector<8x8x128xf32> to vector<8x8xf32>
    %cst_9 = arith.constant 0.0883883461 : f32
    %10 = vector.broadcast %cst_9 : f32 to vector<8x8xf32>
    %11 = arith.mulf %9, %10 : vector<8x8xf32>
    %12 = tpu.iota {dimensions = array<i32: 1>} : vector<8x8xi32>
    %13 = vector.broadcast %2 : vector<8x1xi32> to vector<8x8xi32>
    %14 = arith.cmpi slt, %12, %13 : vector<8x8xi32>
    %cst_10 = arith.constant -1.000000e+09 : f32
    %15 = vector.broadcast %cst_10 : f32 to vector<8x8xf32>
    %16 = arith.select %14, %11, %15 : vector<8x8xi1>, vector<8x8xf32>
    %cst_11 = arith.constant dense<0xFF800000> : vector<8xf32>
    %17 = vector.multi_reduction <maximumf>, %16, %cst_11 [1] : vector<8x8xf32> to vector<8xf32>
    %18 = vector.shape_cast %17 : vector<8xf32> to vector<8x1xf32>
    %19 = vector.broadcast %18 : vector<8x1xf32> to vector<8x8xf32>
    %20 = arith.subf %16, %19 : vector<8x8xf32>
    %21 = math.exp %20 : vector<8x8xf32>
    %cst_12 = arith.constant dense<0.000000e+00> : vector<8xf32>
    %22 = vector.multi_reduction <add>, %21, %cst_12 [1] : vector<8x8xf32> to vector<8xf32>
    %23 = vector.shape_cast %22 : vector<8xf32> to vector<8x1xf32>
    %24 = tpu.reciprocal %23 {approx = true} : vector<8x1xf32> -> vector<8x1xf32>
    %25 = vector.broadcast %24 : vector<8x1xf32> to vector<8x8xf32>
    %26 = arith.mulf %21, %25 : vector<8x8xf32>
    %27 = vector.shape_cast %26 : vector<8x8xf32> to vector<8x8x1xf32>
    %28 = arith.extf %0 : vector<8x8x128xbf16> to vector<8x8x128xf32>
    %29 = vector.broadcast %27 : vector<8x8x1xf32> to vector<8x8x128xf32>
    %30 = arith.mulf %29, %28 : vector<8x8x128xf32>
    %cst_13 = arith.constant dense<0.000000e+00> : vector<8x128xf32>
    %31 = vector.multi_reduction <add>, %30, %cst_13 [1] : vector<8x8x128xf32> to vector<8x128xf32>
    %32 = arith.extf %1 : vector<8x128xbf16> to vector<8x128xf32>
    %33 = arith.truncf %31 : vector<8x128xf32> to vector<8x128xbf16>
    %c0_14 = arith.constant 0 : index
    %c0_15 = arith.constant 0 : index
    %34 = vector.load %arg5[%c0_14, %c0_15] : memref<128x128xbf16, #tpu.memory_space<vmem>>, vector<128x128xbf16>
    %cst_16 = arith.constant dense<0.000000e+00> : vector<8x128xf32>
    %35 = tpu.matmul %33, %34, %cst_16 {dimension_numbers = #tpu.dot_dimension_numbers<[1], [0], [0], [1], [0, 0, 1, 1], [], []>} : vector<8x128xbf16>, vector<128x128xbf16>, vector<8x128xf32> -> vector<8x128xf32>
    %36 = arith.addf %32, %35 : vector<8x128xf32>
    %37 = arith.truncf %36 : vector<8x128xf32> to vector<8x128xbf16>
    %c0_17 = arith.constant 0 : index
    %c0_18 = arith.constant 0 : index
    %38 = vector.load %arg6[%c0_17, %c0_18] : memref<128x256xbf16, #tpu.memory_space<vmem>>, vector<128x256xbf16>
    %cst_19 = arith.constant dense<0.000000e+00> : vector<8x256xf32>
    %39 = tpu.matmul %37, %38, %cst_19 {dimension_numbers = #tpu.dot_dimension_numbers<[1], [0], [0], [1], [0, 0, 1, 1], [], []>} : vector<8x128xbf16>, vector<128x256xbf16>, vector<8x256xf32> -> vector<8x256xf32>
    %cst_20 = arith.constant 0.000000e+00 : f32
    %40 = vector.broadcast %cst_20 : f32 to vector<8x256xf32>
    %41 = arith.maximumf %39, %40 : vector<8x256xf32>
    %42 = arith.truncf %41 : vector<8x256xf32> to vector<8x256xbf16>
    %c0_21 = arith.constant 0 : index
    %c0_22 = arith.constant 0 : index
    %43 = vector.load %arg7[%c0_21, %c0_22] : memref<256x128xbf16, #tpu.memory_space<vmem>>, vector<256x128xbf16>
    %cst_23 = arith.constant dense<0.000000e+00> : vector<8x128xf32>
    %44 = tpu.matmul %42, %43, %cst_23 {dimension_numbers = #tpu.dot_dimension_numbers<[1], [0], [0], [1], [0, 0, 1, 1], [], []>} : vector<8x256xbf16>, vector<256x128xbf16>, vector<8x128xf32> -> vector<8x128xf32>
    %45 = arith.addf %36, %44 : vector<8x128xf32>
    %c0_24 = arith.constant 0 : index
    %c0_25 = arith.constant 0 : index
    %46 = vector.load %arg8[%c0_24, %c0_25] : memref<8x128xf32, #tpu.memory_space<vmem>>, vector<8x128xf32>
    tpu.vector_store %arg8[%c0_24, %c0_25], %45 {strides = array<i32>} : memref<8x128xf32, #tpu.memory_space<vmem>>, vector<8x128xf32>,
    return
  }
  func.func @transform_0(%arg0: i32) -> (i32, i32, i32) {
    %c0_i32 = arith.constant 0 : i32
    %c0_i32_0 = arith.constant 0 : i32
    %c0_i32_1 = arith.constant 0 : i32
    return %arg0, %c0_i32, %c0_i32_0 : i32, i32, i32
  }
  func.func @transform_1(%arg0: i32) -> (i32, i32) {
    %c0_i32 = arith.constant 0 : i32
    %c0_i32_0 = arith.constant 0 : i32
    return %arg0, %c0_i32 : i32, i32
  }
  func.func @transform_2(%arg0: i32) -> (i32, i32) {
    %c0_i32 = arith.constant 0 : i32
    %c0_i32_0 = arith.constant 0 : i32
    return %arg0, %c0_i32 : i32, i32
  }
  func.func @transform_3(%arg0: i32) -> (i32, i32) {
    %c0_i32 = arith.constant 0 : i32
    %c0_i32_0 = arith.constant 0 : i32
    %c0_i32_1 = arith.constant 0 : i32
    return %c0_i32, %c0_i32_0 : i32, i32
  }
  func.func @transform_4(%arg0: i32) -> (i32, i32) {
    %c0_i32 = arith.constant 0 : i32
    %c0_i32_0 = arith.constant 0 : i32
    %c0_i32_1 = arith.constant 0 : i32
    return %c0_i32, %c0_i32_0 : i32, i32
  }
  func.func @transform_5(%arg0: i32) -> (i32, i32) {
    %c0_i32 = arith.constant 0 : i32
    %c0_i32_0 = arith.constant 0 : i32
    %c0_i32_1 = arith.constant 0 : i32
    return %c0_i32, %c0_i32_0 : i32, i32
  }
  func.func @transform_6(%arg0: i32) -> (i32, i32) {
    %c0_i32 = arith.constant 0 : i32
    %c0_i32_0 = arith.constant 0 : i32
    %c0_i32_1 = arith.constant 0 : i32
    return %c0_i32, %c0_i32_0 : i32, i32
  }
  func.func @transform_7(%arg0: i32) -> (i32, i32) {
    %c0_i32 = arith.constant 0 : i32
    %c0_i32_0 = arith.constant 0 : i32
    return %arg0, %c0_i32 : i32, i32
  }
}

</mosaic_0001>

<llo_original>
// kernel: tour_embedding_forward.1
$region0: #{tour_embedding_forward.1}
  #allocation0 [shape = 'u32[]', space=smem, size = 0x4, offset = 0x4, fixed_abs, tag = 'smem constant byte address 0x4 - core index']
  #allocation1 [shape = 'u32[144,128]{1,0:T(1,128)}', space=vmem, size = 0x12000, scoped, tag = 'internal scratch']
  %s0 = inlined_call_operand.vmem [shape: bf16[64,8,128], index: 0, kind: input, shape index: {}]
  %s1 = inlined_call_operand.vmem [shape: bf16[64,128], index: 1, kind: input, shape index: {}]
  %s2 = inlined_call_operand.vmem [shape: s32[64,1], index: 2, kind: input, shape index: {}]
  %s3 = inlined_call_operand.vmem [shape: bf16[128,128], index: 3, kind: input, shape index: {}]
  %s4 = inlined_call_operand.vmem [shape: bf16[128,128], index: 4, kind: input, shape index: {}]
  %s5 = inlined_call_operand.vmem [shape: bf16[128,256], index: 5, kind: input, shape index: {}]
  %s6 = inlined_call_operand.vmem [shape: bf16[256,128], index: 6, kind: input, shape index: {}]
  %s7 = inlined_call_operand.vmem [shape: f32[64,128], index: 7, kind: output, shape index: {}]
  %s8 = sld [smem:[#allocation0]]
  $region61: #{tour_embedding_forward.1} parent=0
    _
  %s10 = ssub.s32 1, %s8
  %s11 = scalar_select 0, %s10, %s8
  loop: start=0, step=1, limit=10
  $region2: #{tour_embedding_forward.1} parent=0 // loop_pre_header
    _
  $region3: #{tour_embedding_forward.1} parent=0 // loop_header
    %s13 = sphi 0, %s17
    %p14 = scmp.ge.s32.totalorder %s13, 10
    %s23 = sphi 0, %s25
    %s26 = sphi 0, %s23
    %s27 = sphi 0, %s26
    %s43 = sphi 0, %s27
    %s49 = sphi 0, %s51
    %s52 = sphi 0, %s49
    %s53 = sphi 0, %s52
    %s69 = sphi 0, %s53
    %s75 = sphi 0, %s77
    %s78 = sphi 0, %s75
    %s79 = sphi 0, %s78
    %s95 = sphi 0, %s79
    %s99 = sphi 0, %s99
    %s101 = sphi 0, %s99
    %s102 = sphi 0, %s101
    %s116 = sphi 0, %s102
    %s120 = sphi 0, %s120
    %s122 = sphi 0, %s120
    %s123 = sphi 0, %s122
    %s137 = sphi 0, %s123
    %s141 = sphi 0, %s141
    %s143 = sphi 0, %s141
    %s144 = sphi 0, %s143
    %s158 = sphi 0, %s144
    %s162 = sphi 0, %s162
    %s164 = sphi 0, %s162
    %s165 = sphi 0, %s164
    %s179 = sphi 0, %s165
    %s185 = sphi 0, %s187
    %s188 = sphi 0, %s185
    %s189 = sphi 0, %s188
    %s205 = sphi 0, %s189
  $region4: #{tour_embedding_forward.1} parent=0 // loop_header_branch
    %16 = sbr.rel (%p14) target = $region8
  $region5: #{tour_embedding_forward.1} parent=0 // loop_body
    %s18 = ssub.s32 %s13, 1
    %s19 = ssub.s32 %s13, 2
    %s20 = sadd.s32 %s13, 1
    %s21 = ssub.s32 %s13, %s20
    %p22 = scmp.eq.s32.totalorder %s21, 0
    %s24 = sadd.s32 %s23, 1
    %s25 = scalar_select %p22, %s23, %s24
    %p28 = pneg %p22
    %p29 = scmp.eq.s32.totalorder %s13, 7
    %p30 = por %p28, %p29
    %p31 = scmp.ne.s32.totalorder %s23, %s26
    %p32 = scmp.eq.s32.totalorder %s13, 0
    %p33 = por %p31, %p32
    %p34 = scmp.ne.s32.totalorder %s23, %s26
    %p35 = scmp.eq.s32.totalorder %s18, 7
    %p36 = por %p34, %p35
    %p37 = scmp.ne.s32.totalorder %s26, %s27
    %p38 = scmp.eq.s32.totalorder %s18, 0
    %p39 = por %p37, %p38
    %p40 = scmp.ne.s32.totalorder %s26, %s27
    %p41 = scmp.eq.s32.totalorder %s19, 7
    %p42 = por %p40, %p41
    %p44 = scmp.ne.s32.totalorder %s27, %s43
    %p45 = scmp.eq.s32.totalorder %s19, 0
    %p46 = por %p44, %p45
    %s47 = ssub.s32 %s13, %s20
    %p48 = scmp.eq.s32.totalorder %s47, 0
    %s50 = sadd.s32 %s49, 1
    %s51 = scalar_select %p48, %s49, %s50
    %p54 = pneg %p48
    %p55 = scmp.eq.s32.totalorder %s13, 7
    %p56 = por %p54, %p55
    %p57 = scmp.ne.s32.totalorder %s49, %s52
    %p58 = scmp.eq.s32.totalorder %s13, 0
    %p59 = por %p57, %p58
    %p60 = scmp.ne.s32.totalorder %s49, %s52
    %p61 = scmp.eq.s32.totalorder %s18, 7
    %p62 = por %p60, %p61
    %p63 = scmp.ne.s32.totalorder %s52, %s53
    %p64 = scmp.eq.s32.totalorder %s18, 0
    %p65 = por %p63, %p64
    %p66 = scmp.ne.s32.totalorder %s52, %s53
    %p67 = scmp.eq.s32.totalorder %s19, 7
    %p68 = por %p66, %p67
    %p70 = scmp.ne.s32.totalorder %s53, %s69
    %p71 = scmp.eq.s32.totalorder %s19, 0
    %p72 = por %p70, %p71
    %s73 = ssub.s32 %s13, %s20
    %p74 = scmp.eq.s32.totalorder %s73, 0
    %s76 = sadd.s32 %s75, 1
    %s77 = scalar_select %p74, %s75, %s76
    %p80 = pneg %p74
    %p81 = scmp.eq.s32.totalorder %s13, 7
    %p82 = por %p80, %p81
    %p83 = scmp.ne.s32.totalorder %s75, %s78
    %p84 = scmp.eq.s32.totalorder %s13, 0
    %p85 = por %p83, %p84
    %p86 = scmp.ne.s32.totalorder %s75, %s78
    %p87 = scmp.eq.s32.totalorder %s18, 7
    %p88 = por %p86, %p87
    %p89 = scmp.ne.s32.totalorder %s78, %s79
    %p90 = scmp.eq.s32.totalorder %s18, 0
    %p91 = por %p89, %p90
    %p92 = scmp.ne.s32.totalorder %s78, %s79
    %p93 = scmp.eq.s32.totalorder %s19, 7
    %p94 = por %p92, %p93
    %p96 = scmp.ne.s32.totalorder %s79, %s95
    %p97 = scmp.eq.s32.totalorder %s19, 0
    %p98 = por %p96, %p97
    %s100 = sadd.s32 %s99, 1
    %p103 = scmp.eq.s32.totalorder %s13, 7
    %p104 = scmp.ne.s32.totalorder %s99, %s101
    %p105 = scmp.eq.s32.totalorder %s13, 0
    %p106 = por %p104, %p105
    %p107 = scmp.ne.s32.totalorder %s99, %s101
    %p108 = scmp.eq.s32.totalorder %s18, 7
    %p109 = por %p107, %p108
    %p110 = scmp.ne.s32.totalorder %s101, %s102
    %p111 = scmp.eq.s32.totalorder %s18, 0
    %p112 = por %p110, %p111
    %p113 = scmp.ne.s32.totalorder %s101, %s102
    %p114 = scmp.eq.s32.totalorder %s19, 7
    %p115 = por %p113, %p114
    %p117 = scmp.ne.s32.totalorder %s102, %s116
    %p118 = scmp.eq.s32.totalorder %s19, 0
    %p119 = por %p117, %p118
    %s121 = sadd.s32 %s120, 1
    %p124 = scmp.eq.s32.totalorder %s13, 7
    %p125 = scmp.ne.s32.totalorder %s120, %s122
    %p126 = scmp.eq.s32.totalorder %s13, 0
    %p127 = por %p125, %p126
    %p128 = scmp.ne.s32.totalorder %s120, %s122
    %p129 = scmp.eq.s32.totalorder %s18, 7
    %p130 = por %p128, %p129
    %p131 = scmp.ne.s32.totalorder %s122, %s123
    %p132 = scmp.eq.s32.totalorder %s18, 0
    %p133 = por %p131, %p132
    %p134 = scmp.ne.s32.totalorder %s122, %s123
    %p135 = scmp.eq.s32.totalorder %s19, 7
    %p136 = por %p134, %p135
    %p138 = scmp.ne.s32.totalorder %s123, %s137
    %p139 = scmp.eq.s32.totalorder %s19, 0
    %p140 = por %p138, %p139
    %s142 = sadd.s32 %s141, 1
    %p145 = scmp.eq.s32.totalorder %s13, 7
    %p146 = scmp.ne.s32.totalorder %s141, %s143
    %p147 = scmp.eq.s32.totalorder %s13, 0
    %p148 = por %p146, %p147
    %p149 = scmp.ne.s32.totalorder %s141, %s143
    %p150 = scmp.eq.s32.totalorder %s18, 7
    %p151 = por %p149, %p150
    %p152 = scmp.ne.s32.totalorder %s143, %s144
    %p153 = scmp.eq.s32.totalorder %s18, 0
    %p154 = por %p152, %p153
    %p155 = scmp.ne.s32.totalorder %s143, %s144
    %p156 = scmp.eq.s32.totalorder %s19, 7
    %p157 = por %p155, %p156
    %p159 = scmp.ne.s32.totalorder %s144, %s158
    %p160 = scmp.eq.s32.totalorder %s19, 0
    %p161 = por %p159, %p160
    %s163 = sadd.s32 %s162, 1
    %p166 = scmp.eq.s32.totalorder %s13, 7
    %p167 = scmp.ne.s32.totalorder %s162, %s164
    %p168 = scmp.eq.s32.totalorder %s13, 0
    %p169 = por %p167, %p168
    %p170 = scmp.ne.s32.totalorder %s162, %s164
    %p171 = scmp.eq.s32.totalorder %s18, 7
    %p172 = por %p170, %p171
    %p173 = scmp.ne.s32.totalorder %s164, %s165
    %p174 = scmp.eq.s32.totalorder %s18, 0
    %p175 = por %p173, %p174
    %p176 = scmp.ne.s32.totalorder %s164, %s165
    %p177 = scmp.eq.s32.totalorder %s19, 7
    %p178 = por %p176, %p177
    %p180 = scmp.ne.s32.totalorder %s165, %s179
    %p181 = scmp.eq.s32.totalorder %s19, 0
    %p182 = por %p180, %p181
    %s183 = ssub.s32 %s13, %s20
    %p184 = scmp.eq.s32.totalorder %s183, 0
    %s186 = sadd.s32 %s185, 1
    %s187 = scalar_select %p184, %s185, %s186
    %p190 = pneg %p184
    %p191 = scmp.eq.s32.totalorder %s13, 7
    %p192 = por %p190, %p191
    %p193 = scmp.ne.s32.totalorder %s185, %s188
    %p194 = scmp.eq.s32.totalorder %s13, 0
    %p195 = por %p193, %p194
    %p196 = scmp.ne.s32.totalorder %s185, %s188
    %p197 = scmp.eq.s32.totalorder %s18, 7
    %p198 = por %p196, %p197
    %p199 = scmp.ne.s32.totalorder %s188, %s189
    %p200 = scmp.eq.s32.totalorder %s18, 0
    %p201 = por %p199, %p200
    %p202 = scmp.ne.s32.totalorder %s188, %s189
    %p203 = scmp.eq.s32.totalorder %s19, 7
    %p204 = por %p202, %p203
    %p206 = scmp.ne.s32.totalorder %s189, %s205
    %p207 = scmp.eq.s32.totalorder %s19, 0
    %p208 = por %p206, %p207
    %p209 = scmp.le.s32.totalorder 1, %s13
    %p210 = scmp.lt.s32.totalorder %s13, 9
    %p211 = pnand %p209, %p210
    %p212 = pneg %p211
    // Predicated region
    $region9: #{tour_embedding_forward.1} parent=5 // pred_check
      _
    $region10: #{tour_embedding_forward.1} parent=5 // pred_check_branch
      %214 = sbr.rel (%p211) target = $region12
    $region11: #{tour_embedding_forward.1} parent=5 // pred_region
      %s215 = ssub.s32 %s13, 1
      // Predicated region
      $region13: #{tour_embedding_forward.1} parent=11 // pred_check
        %p216 = pneg %p112
      $region14: #{tour_embedding_forward.1} parent=11 // pred_check_branch
        %218 = sbr.rel (%p216) target = $region16
      $region15: #{tour_embedding_forward.1} parent=11 // pred_region
        _
      $region16: #{tour_embedding_forward.1} parent=11 // pred_fallthru
        _
      // Predicated region
      $region17: #{tour_embedding_forward.1} parent=11 // pred_check
        %p219 = pneg %p133
      $region18: #{tour_embedding_forward.1} parent=11 // pred_check_branch
        %221 = sbr.rel (%p219) target = $region20
      $region19: #{tour_embedding_forward.1} parent=11 // pred_region
        _
      $region20: #{tour_embedding_forward.1} parent=11 // pred_fallthru
        _
      // Predicated region
      $region21: #{tour_embedding_forward.1} parent=11 // pred_check
        %p222 = pneg %p154
      $region22: #{tour_embedding_forward.1} parent=11 // pred_check_branch
        %224 = sbr.rel (%p222) target = $region24
      $region23: #{tour_embedding_forward.1} parent=11 // pred_region
        _
      $region24: #{tour_embedding_forward.1} parent=11 // pred_fallthru
        _
      // Predicated region
      $region25: #{tour_embedding_forward.1} parent=11 // pred_check
        %p225 = pneg %p175
      $region26: #{tour_embedding_forward.1} parent=11 // pred_check_branch
        %227 = sbr.rel (%p225) target = $region28
      $region27: #{tour_embedding_forward.1} parent=11 // pred_region
        _
      $region28: #{tour_embedding_forward.1} parent=11 // pred_fallthru
        _
    $region12: #{tour_embedding_forward.1} parent=5 // pred_fallthru
      _
    %p228 = scmp.lt.s32.totalorder %s13, 8
    // Predicated region
    $region29: #{tour_embedding_forward.1} parent=5 // pred_check
      %p229 = pneg %p228
    $region30: #{tour_embedding_forward.1} parent=5 // pred_check_branch
      %231 = sbr.rel (%p229) target = $region32
    $region31: #{tour_embedding_forward.1} parent=5 // pred_region
      // Predicated region
      $region33: #{tour_embedding_forward.1} parent=31 // pred_check
        %p232 = pneg %p33
      $region34: #{tour_embedding_forward.1} parent=31 // pred_check_branch
        %234 = sbr.rel (%p232) target = $region36
      $region35: #{tour_embedding_forward.1} parent=31 // pred_region
        %s235 = smul.u32 8, %s13
        %p236 = scmp.lt.s32.totalorder %s235, 63
        %s237 = scalar_select %p236, %s235, 63
        %s238 = smul.addr %s237, 4
        %s239 = scalar_lea.vmem %s0, %s238
        %s240 = smul.u32 8, %s13
      $region36: #{tour_embedding_forward.1} parent=31 // pred_fallthru
        _
      // Predicated region
      $region37: #{tour_embedding_forward.1} parent=31 // pred_check
        %p241 = pneg %p59
      $region38: #{tour_embedding_forward.1} parent=31 // pred_check_branch
        %243 = sbr.rel (%p241) target = $region40
      $region39: #{tour_embedding_forward.1} parent=31 // pred_region
        %p244 = scmp.lt.s32.totalorder %s13, 7
        %s245 = scalar_select %p244, %s13, 7
        %s246 = smul.addr %s245, 4
        %s247 = scalar_lea.vmem %s1, %s246
      $region40: #{tour_embedding_forward.1} parent=31 // pred_fallthru
        _
      // Predicated region
      $region41: #{tour_embedding_forward.1} parent=31 // pred_check
        %p248 = pneg %p85
      $region42: #{tour_embedding_forward.1} parent=31 // pred_check_branch
        %250 = sbr.rel (%p248) target = $region44
      $region43: #{tour_embedding_forward.1} parent=31 // pred_region
        %p251 = scmp.lt.s32.totalorder %s13, 7
        %s252 = scalar_select %p251, %s13, 7
        %s253 = smul.addr %s252, 8
        %s254 = scalar_lea.vmem %s2, %s253
      $region44: #{tour_embedding_forward.1} parent=31 // pred_fallthru
        _
    $region32: #{tour_embedding_forward.1} parent=5 // pred_fallthru
      _
    %p255 = scmp.le.s32.totalorder 1, %s13
    %p256 = scmp.lt.s32.totalorder %s13, 9
    %p257 = pnand %p255, %p256
    %p258 = pneg %p257
    // Predicated region
    $region45: #{tour_embedding_forward.1} parent=5 // pred_check
      _
    $region46: #{tour_embedding_forward.1} parent=5 // pred_check_branch
      %260 = sbr.rel (%p257) target = $region48
    $region47: #{tour_embedding_forward.1} parent=5 // pred_region
      %s261 = ssub.s32 %s13, 1
      %s262 = smul.u32 8, %s18
      %p263 = scmp.lt.s32.totalorder %s262, 63
      %s264 = scalar_select %p263, %s262, 63
      %s265 = smul.addr %s264, 4
      %s266 = scalar_lea.vmem %s0, %s265
      %p267 = pneg %p39
      %p268 = pneg %p36
      %p269 = scmp.lt.s32.totalorder %s18, 7
      %s270 = scalar_select %p269, %s18, 7
      %s271 = smul.addr %s270, 4
      %s272 = scalar_lea.vmem %s1, %s271
      %p273 = pneg %p65
      %p274 = pneg %p62
      %p275 = scmp.lt.s32.totalorder %s18, 7
      %s276 = scalar_select %p275, %s18, 7
      %s277 = smul.addr %s276, 8
      %s278 = scalar_lea.vmem %s2, %s277
      %p279 = pneg %p91
      %p280 = pneg %p88
      %p281 = pneg %p112
      %p282 = pneg %p109
      %p283 = pneg %p133
      %p284 = pneg %p130
      %p285 = pneg %p154
      %p286 = pneg %p151
      %p287 = pneg %p175
      %p288 = pneg %p172
      %p289 = pneg %p201
      %p290 = pneg %p198
      %p291 = scmp.lt.s32.totalorder %s18, 7
      %s292 = scalar_select %p291, %s18, 7
      %s293 = smul.addr %s292, 8
      %s294 = scalar_lea.vmem %s7, %s293
      %s295 = smul.u32 8, %s18
      %p296 = scmp.lt.s32.totalorder %s295, 63
      %s297 = scalar_select %p296, %s295, 63
      %s298 = smul.addr %s297, 4
      %s299 = scalar_lea.vmem %s0, %s298
      %s300 = smul.u32 8, %s18
      %p301 = scmp.lt.s32.totalorder %s18, 7
      %s302 = scalar_select %p301, %s18, 7
      %s303 = smul.addr %s302, 4
      %s304 = scalar_lea.vmem %s1, %s303
      %p305 = scmp.lt.s32.totalorder %s18, 7
      %s306 = scalar_select %p305, %s18, 7
      %s307 = smul.addr %s306, 8
      %s308 = scalar_lea.vmem %s2, %s307
      %p309 = scmp.lt.s32.totalorder %s18, 7
      %s310 = scalar_select %p309, %s18, 7
      %s311 = smul.addr %s310, 8
      %s312 = scalar_lea.vmem %s7, %s311
      %v314 = vld [vmem:[%s299] sm:$0xf]
      %v315 = vld [vmem:[%s299 + $0x4] sm:$0xf]
      %v316 = vld [vmem:[%s299 + $0x8] sm:$0xf]
      %v317 = vld [vmem:[%s299 + $0xc] sm:$0xf]
      %v318 = vld [vmem:[%s299 + $0x10] sm:$0xf]
      %v319 = vld [vmem:[%s299 + $0x14] sm:$0xf]
      %v320 = vld [vmem:[%s299 + $0x18] sm:$0xf]
      %v321 = vld [vmem:[%s299 + $0x1c] sm:$0xf]
      %v322 = vld [vmem:[%s304] sm:$0xf]
      %v323 = vld [vmem:[%s308] sm:$0xff]
      %v324 = vld [vmem:[%s3] sm:$0xf]
      %v325 = vld [vmem:[%s3 + $0x4] sm:$0xf]
      %v326 = vld [vmem:[%s3 + $0x8] sm:$0xf]
      %v327 = vld [vmem:[%s3 + $0xc] sm:$0xf]
      %v328 = vld [vmem:[%s3 + $0x10] sm:$0xf]
      %v329 = vld [vmem:[%s3 + $0x14] sm:$0xf]
      %v330 = vld [vmem:[%s3 + $0x18] sm:$0xf]
      %v331 = vld [vmem:[%s3 + $0x1c] sm:$0xf]
      %v332 = vld [vmem:[%s3 + $0x20] sm:$0xf]
      %v333 = vld [vmem:[%s3 + $0x24] sm:$0xf]
      %v334 = vld [vmem:[%s3 + $0x28] sm:$0xf]
      %v335 = vld [vmem:[%s3 + $0x2c] sm:$0xf]
      %v336 = vld [vmem:[%s3 + $0x30] sm:$0xf]
      %v337 = vld [vmem:[%s3 + $0x34] sm:$0xf]
      %v338 = vld [vmem:[%s3 + $0x38] sm:$0xf]
      %v339 = vld [vmem:[%s3 + $0x3c] sm:$0xf]
      %v356 = vunpack.c.l.b16 %v324
      %v357 = vunpack.c.l.b16 %v325
      %v358 = vunpack.c.l.b16 %v326
      %v359 = vunpack.c.l.b16 %v327
      %v360 = vunpack.c.l.b16 %v328
      %v361 = vunpack.c.l.b16 %v329
      %v362 = vunpack.c.l.b16 %v330
      %v363 = vunpack.c.l.b16 %v331
      %v364 = vunpack.c.l.b16 %v332
      %v365 = vunpack.c.l.b16 %v333
      %v366 = vunpack.c.l.b16 %v334
      %v367 = vunpack.c.l.b16 %v335
      %v368 = vunpack.c.l.b16 %v336
      %v369 = vunpack.c.l.b16 %v337
      %v370 = vunpack.c.l.b16 %v338
      %v371 = vunpack.c.l.b16 %v339
      %v372 = vpack.c.b16 %v357, %v356
      %v373 = vpack.c.b16 %v359, %v358
      %v374 = vpack.c.b16 %v361, %v360
      %v375 = vpack.c.b16 %v363, %v362
      %v376 = vpack.c.b16 %v365, %v364
      %v377 = vpack.c.b16 %v367, %v366
      %v378 = vpack.c.b16 %v369, %v368
      %v379 = vpack.c.b16 %v371, %v370
      %388 = vmatprep.subr.bf16.mxu0 0
      %389 = vmatpush1.bf16.msra.mxu0 %v372
      %390 = vmatprep.subr.bf16.mxu0 0
      %391 = vmatpush1.bf16.msra.mxu0 %v373
      %392 = vmatprep.subr.bf16.mxu0 0
      %393 = vmatpush1.bf16.msra.mxu0 %v374
      %394 = vmatprep.subr.bf16.mxu0 0
      %395 = vmatpush1.bf16.msra.mxu0 %v375
      %396 = vmatprep.subr.bf16.mxu0 0
      %397 = vmatpush1.bf16.msra.mxu0 %v376
      %398 = vmatprep.subr.bf16.mxu0 0
      %399 = vmatpush1.bf16.msra.mxu0 %v377
      %400 = vmatprep.subr.bf16.mxu0 0
      %401 = vmatpush1.bf16.msra.mxu0 %v378
      %402 = vmatprep.subr.bf16.mxu0 0
      %403 = vmatpush1.bf16.msra.mxu0 %v379
      %404 = vmatprep.subr.bf16.mxu0 0
      %405 = vmatpush1.bf16.msra.mxu0 0
      %406 = vmatprep.subr.bf16.mxu0 0
      %407 = vmatpush1.bf16.msra.mxu0 0
      %408 = vmatprep.subr.bf16.mxu0 0
      %409 = vmatpush1.bf16.msra.mxu0 0
      %410 = vmatprep.subr.bf16.mxu0 0
      %411 = vmatpush1.bf16.msra.mxu0 0
      %412 = vmatprep.subr.bf16.mxu0 0
      %413 = vmatpush1.bf16.msra.mxu0 0
      %414 = vmatprep.subr.bf16.mxu0 0
      %415 = vmatpush1.bf16.msra.mxu0 0
      %416 = vmatprep.subr.bf16.mxu0 0
      %417 = vmatpush1.bf16.msra.mxu0 0
      %418 = vmatprep.subr.bf16.mxu0 0
      %419 = vmatpush1.bf16.msra.mxu0 0
      %420 = vmatprep.mubr.bf16.mxu0 0
      %421 = vmatmul.mubr.bf16.gmra.mrb[0].mxu0 %v322
      %v422 = vpop.f32.mrb[0].mxu0
      %v423 = vadd.f32 0.0, %v422
      %v424 = vpop.f32.mrb[0].mxu0
      %v425 = vpop.f32.mrb[0].mxu0
      %v426 = vpop.f32.mrb[0].mxu0
      %427 = vdwg.mxu0
      %v429 = vcombine.high %v423, %v423
      %v431 = vunpack.c.l.s4 1966171168
      %v432 = vunpack.c.0.s8 %v431
      %v433 = vlaneseq
      %v434 = vshrl.u32 %v433, 7
      %v435 = vsub.s32 %v432, %v434
      %v436 = vrot.slane %v423, %v435
      %v438 = vunpack.c.l.s4 1966171168
      %v439 = vunpack.c.0.s8 %v438
      %v440 = vlaneseq
      %v441 = vshrl.u32 %v440, 7
      %v442 = vsub.s32 %v439, %v441
      %v443 = vrot.slane %v429, %v442
      %v444 = vcombine.high %v436, %v436
      %v445 = vcombine.high %v443, %v443
      %v447 = vunpack.c.l.s4 1966171168
      %v448 = vunpack.c.0.s8 %v447
      %v449 = vlaneseq
      %v450 = vshrl.u32 %v449, 7
      %v451 = vsub.s32 %v448, %v450
      %v452 = vrot.slane %v436, %v451
      %v454 = vunpack.c.l.s4 1966171168
      %v455 = vunpack.c.0.s8 %v454
      %v456 = vlaneseq
      %v457 = vshrl.u32 %v456, 7
      %v458 = vsub.s32 %v455, %v457
      %v459 = vrot.slane %v443, %v458
      %v461 = vunpack.c.l.s4 1966171168
      %v462 = vunpack.c.0.s8 %v461
      %v463 = vlaneseq
      %v464 = vshrl.u32 %v463, 7
      %v465 = vsub.s32 %v462, %v464
      %v466 = vrot.slane %v444, %v465
      %v468 = vunpack.c.l.s4 1966171168
      %v469 = vunpack.c.0.s8 %v468
      %v470 = vlaneseq
      %v471 = vshrl.u32 %v470, 7
      %v472 = vsub.s32 %v469, %v471
      %v473 = vrot.slane %v445, %v472
      %v474 = vcombine.high %v452, %v452
      %v475 = vcombine.high %v459, %v459
      %v476 = vcombine.high %v466, %v466
      %v477 = vcombine.high %v473, %v473
      %v478 = vunpack.c.l.bf16 %v314
      %v479 = vunpack.c.l.bf16 %v315
      %v480 = vunpack.c.l.bf16 %v316
      %v481 = vunpack.c.l.bf16 %v317
      %v482 = vunpack.c.l.bf16 %v318
      %v483 = vunpack.c.l.bf16 %v319
      %v484 = vunpack.c.l.bf16 %v320
      %v485 = vunpack.c.l.bf16 %v321
      %v486 = vlaneseq
      %v487 = vshrl.u32 %v486, 7
      %v488 = vsub.s32 0, %v487
      %v489 = vrot.slane %v452, %v488
      %v490 = vlaneseq
      %v491 = vshrl.u32 %v490, 7
      %v492 = vsub.s32 0, %v491
      %v493 = vrot.slane %v466, %v492
      %v494 = vlaneseq
      %v495 = vshrl.u32 %v494, 7
      %v496 = vsub.s32 0, %v495
      %v497 = vrot.slane %v474, %v496
      %v498 = vlaneseq
      %v499 = vshrl.u32 %v498, 7
      %v500 = vsub.s32 0, %v499
      %v501 = vrot.slane %v476, %v500
      %v502 = vlaneseq
      %v503 = vshrl.u32 %v502, 7
      %v504 = vsub.s32 0, %v503
      %v505 = vrot.slane %v459, %v504
      %v506 = vlaneseq
      %v507 = vshrl.u32 %v506, 7
      %v508 = vsub.s32 0, %v507
      %v509 = vrot.slane %v473, %v508
      %v510 = vlaneseq
      %v511 = vshrl.u32 %v510, 7
      %v512 = vsub.s32 0, %v511
      %v513 = vrot.slane %v475, %v512
      %v514 = vlaneseq
      %v515 = vshrl.u32 %v514, 7
      %v516 = vsub.s32 0, %v515
      %v517 = vrot.slane %v477, %v516
      %v526 = vmul.f32 %v489, %v478
      %v527 = vmul.f32 %v493, %v479
      %v528 = vmul.f32 %v497, %v480
      %v529 = vmul.f32 %v501, %v481
      %v530 = vmul.f32 %v505, %v482
      %v531 = vmul.f32 %v509, %v483
      %v532 = vmul.f32 %v513, %v484
      %v533 = vmul.f32 %v517, %v485
      %534 = vadd.xlane.f32.xlu0 %v526
      %v535 = vpop.xlane.xlu0 %534
      %536 = vadd.xlane.f32.xlu0 %v527
      %v537 = vpop.xlane.xlu0 %536
      %538 = vadd.xlane.f32.xlu0 %v528
      %v539 = vpop.xlane.xlu0 %538
      %540 = vadd.xlane.f32.xlu0 %v529
      %v541 = vpop.xlane.xlu0 %540
      %542 = vadd.xlane.f32.xlu0 %v530
      %v543 = vpop.xlane.xlu0 %542
      %544 = vadd.xlane.f32.xlu0 %v531
      %v545 = vpop.xlane.xlu0 %544
      %546 = vadd.xlane.f32.xlu0 %v532
      %v547 = vpop.xlane.xlu0 %546
      %548 = vadd.xlane.f32.xlu0 %v533
      %v549 = vpop.xlane.xlu0 %548
      %v550 = vmul.f32 %v535, 0.088388346
      %v551 = vmul.f32 %v537, 0.088388346
      %v552 = vmul.f32 %v539, 0.088388346
      %v553 = vmul.f32 %v541, 0.088388346
      %v554 = vmul.f32 %v543, 0.088388346
      %v555 = vmul.f32 %v545, 0.088388346
      %v556 = vmul.f32 %v547, 0.088388346
      %v557 = vmul.f32 %v549, 0.088388346
      %v558 = vlaneseq
      %v559 = vand.u32 %v558, 127
      %560 = vset.pattern.permute.xlu0 0
      %561 = vperm.xlu0 %560, %v323
      %v562 = vpop.permute.xlu0 %561
      %vm563 = vcmp.lt.s32.totalorder %v559, %v562
      %v572 = vlaneseq
      %v573 = vshrl.u32 %v572, 7
      %v574 = vsub.s32 %v559, %v573
      %v575 = vrot.slane %v550, %v574
      %v576 = vlaneseq
      %v577 = vshrl.u32 %v576, 7
      %v578 = vsub.s32 %v559, %v577
      %v579 = vrot.slane %v551, %v578
      %v580 = vlaneseq
      %v581 = vshrl.u32 %v580, 7
      %v582 = vsub.s32 %v559, %v581
      %v583 = vrot.slane %v552, %v582
      %v584 = vlaneseq
      %v585 = vshrl.u32 %v584, 7
      %v586 = vsub.s32 %v559, %v585
      %v587 = vrot.slane %v553, %v586
      %v588 = vlaneseq
      %v589 = vshrl.u32 %v588, 7
      %v590 = vsub.s32 %v559, %v589
      %v591 = vrot.slane %v554, %v590
      %v592 = vlaneseq
      %v593 = vshrl.u32 %v592, 7
      %v594 = vsub.s32 %v559, %v593
      %v595 = vrot.slane %v555, %v594
      %v596 = vlaneseq
      %v597 = vshrl.u32 %v596, 7
      %v598 = vsub.s32 %v559, %v597
      %v599 = vrot.slane %v556, %v598
      %v600 = vlaneseq
      %v601 = vshrl.u32 %v600, 7
      %v602 = vsub.s32 %v559, %v601
      %v603 = vrot.slane %v557, %v602
      %vm604 = vcmask 1041409
      %v605 = vsel %vm604, %v579, %v575
      %vm606 = vcmask 1042434
      %v607 = vsel %vm606, %v583, %v605
      %vm608 = vcmask 1043459
      %v609 = vsel %vm608, %v587, %v607
      %vm610 = vcmask 1044484
      %v611 = vsel %vm610, %v591, %v609
      %vm612 = vcmask 1045509
      %v613 = vsel %vm612, %v595, %v611
      %vm614 = vcmask 1046534
      %v615 = vsel %vm614, %v599, %v613
      %vm616 = vcmask 1047559
      %v617 = vsel %vm616, %v603, %v615
      %v619 = vsel %vm563, %v617, -1e+09
      %vm620 = vcmask 64512
      %v621 = vsel %vm620, %v619, -inf
      %622 = vmax.xlane.f32.xlu0 %v621
      %v623 = vpop.xlane.xlu0 %622
      %v624 = vsub.f32 %v619, %v623
      %v625 = vmul.f32 %v624, 1.442695
      %v626 = vpow.pop %v625
      %v627 = vsel %vm620, %v626, 0.0
      %628 = vadd.xlane.f32.xlu0 %v627
      %v629 = vpop.xlane.xlu0 %628
      %v630 = vrcp.pop %v629
      %v631 = vmul.f32 %v626, %v630
      %v632 = vlaneseq
      %v633 = vshrl.u32 %v632, 7
      %v634 = vsub.s32 0, %v633
      %v635 = vrot.slane %v631, %v634
      %637 = vbcast.lane.b32.xlu0 %v635, 256
      %v638 = vpop.permute.xlu0 %637
      %v639 = vlaneseq
      %v640 = vshrl.u32 %v639, 7
      %v641 = vsub.s32 1, %v640
      %v642 = vrot.slane %v631, %v641
      %644 = vbcast.lane.b32.xlu0 %v642, 256
      %v645 = vpop.permute.xlu0 %644
      %v646 = vlaneseq
      %v647 = vshrl.u32 %v646, 7
      %v648 = vsub.s32 2, %v647
      %v649 = vrot.slane %v631, %v648
      %651 = vbcast.lane.b32.xlu0 %v649, 256
      %v652 = vpop.permute.xlu0 %651
      %v653 = vlaneseq
      %v654 = vshrl.u32 %v653, 7
      %v655 = vsub.s32 3, %v654
      %v656 = vrot.slane %v631, %v655
      %658 = vbcast.lane.b32.xlu0 %v656, 256
      %v659 = vpop.permute.xlu0 %658
      %v660 = vlaneseq
      %v661 = vshrl.u32 %v660, 7
      %v662 = vsub.s32 4, %v661
      %v663 = vrot.slane %v631, %v662
      %665 = vbcast.lane.b32.xlu0 %v663, 256
      %v666 = vpop.permute.xlu0 %665
      %v667 = vlaneseq
      %v668 = vshrl.u32 %v667, 7
      %v669 = vsub.s32 5, %v668
      %v670 = vrot.slane %v631, %v669
      %672 = vbcast.lane.b32.xlu0 %v670, 256
      %v673 = vpop.permute.xlu0 %672
      %v674 = vlaneseq
      %v675 = vshrl.u32 %v674, 7
      %v676 = vsub.s32 6, %v675
      %v677 = vrot.slane %v631, %v676
      %679 = vbcast.lane.b32.xlu0 %v677, 256
      %v680 = vpop.permute.xlu0 %679
      %v681 = vlaneseq
      %v682 = vshrl.u32 %v681, 7
      %v683 = vsub.s32 7, %v682
      %v684 = vrot.slane %v631, %v683
      %686 = vbcast.lane.b32.xlu0 %v684, 256
      %v687 = vpop.permute.xlu0 %686
      %v688 = vmul.f32 %v638, %v478
      %v689 = vmul.f32 %v645, %v479
      %v690 = vmul.f32 %v652, %v480
      %v691 = vmul.f32 %v659, %v481
      %v692 = vmul.f32 %v666, %v482
      %v693 = vmul.f32 %v673, %v483
      %v694 = vmul.f32 %v680, %v484
      %v695 = vmul.f32 %v687, %v485
      %v696 = vrot.slane %v688, 4
      %v697 = vadd.f32 %v688, %v696
      %v698 = vrot.slane %v697, 2
      %v699 = vadd.f32 %v697, %v698
      %v700 = vrot.slane %v699, 1
      %v701 = vadd.f32 %v699, %v700
      %v702 = vrot.slane %v689, 4
      %v703 = vadd.f32 %v689, %v702
      %v704 = vrot.slane %v703, 2
      %v705 = vadd.f32 %v703, %v704
      %v706 = vrot.slane %v705, 1
      %v707 = vadd.f32 %v705, %v706
      %v708 = vrot.slane %v690, 4
      %v709 = vadd.f32 %v690, %v708
      %v710 = vrot.slane %v709, 2
      %v711 = vadd.f32 %v709, %v710
      %v712 = vrot.slane %v711, 1
      %v713 = vadd.f32 %v711, %v712
      %v714 = vrot.slane %v691, 4
      %v715 = vadd.f32 %v691, %v714
      %v716 = vrot.slane %v715, 2
      %v717 = vadd.f32 %v715, %v716
      %v718 = vrot.slane %v717, 1
      %v719 = vadd.f32 %v717, %v718
      %v720 = vrot.slane %v692, 4
      %v721 = vadd.f32 %v692, %v720
      %v722 = vrot.slane %v721, 2
      %v723 = vadd.f32 %v721, %v722
      %v724 = vrot.slane %v723, 1
      %v725 = vadd.f32 %v723, %v724
      %v726 = vrot.slane %v693, 4
      %v727 = vadd.f32 %v693, %v726
      %v728 = vrot.slane %v727, 2
      %v729 = vadd.f32 %v727, %v728
      %v730 = vrot.slane %v729, 1
      %v731 = vadd.f32 %v729, %v730
      %v732 = vrot.slane %v694, 4
      %v733 = vadd.f32 %v694, %v732
      %v734 = vrot.slane %v733, 2
      %v735 = vadd.f32 %v733, %v734
      %v736 = vrot.slane %v735, 1
      %v737 = vadd.f32 %v735, %v736
      %v738 = vrot.slane %v695, 4
      %v739 = vadd.f32 %v695, %v738
      %v740 = vrot.slane %v739, 2
      %v741 = vadd.f32 %v739, %v740
      %v742 = vrot.slane %v741, 1
      %v743 = vadd.f32 %v741, %v742
      %v744 = vunpack.c.l.bf16 %v322
      %v745 = vpack.c.bf16 %v701, %v701
      %v746 = vpack.c.bf16 %v707, %v707
      %v747 = vpack.c.bf16 %v713, %v713
      %v748 = vpack.c.bf16 %v719, %v719
      %v749 = vpack.c.bf16 %v725, %v725
      %v750 = vpack.c.bf16 %v731, %v731
      %v751 = vpack.c.bf16 %v737, %v737
      %v752 = vpack.c.bf16 %v743, %v743
      %v753 = vld [vmem:[%s4] sm:$0xf]
      %v754 = vld [vmem:[%s4 + $0x4] sm:$0xf]
      %v755 = vld [vmem:[%s4 + $0x8] sm:$0xf]
      %v756 = vld [vmem:[%s4 + $0xc] sm:$0xf]
      %v757 = vld [vmem:[%s4 + $0x10] sm:$0xf]
      %v758 = vld [vmem:[%s4 + $0x14] sm:$0xf]
      %v759 = vld [vmem:[%s4 + $0x18] sm:$0xf]
      %v760 = vld [vmem:[%s4 + $0x1c] sm:$0xf]
      %v761 = vld [vmem:[%s4 + $0x20] sm:$0xf]
      %v762 = vld [vmem:[%s4 + $0x24] sm:$0xf]
      %v763 = vld [vmem:[%s4 + $0x28] sm:$0xf]
      %v764 = vld [vmem:[%s4 + $0x2c] sm:$0xf]
      %v765 = vld [vmem:[%s4 + $0x30] sm:$0xf]
      %v766 = vld [vmem:[%s4 + $0x34] sm:$0xf]
      %v767 = vld [vmem:[%s4 + $0x38] sm:$0xf]
      %v768 = vld [vmem:[%s4 + $0x3c] sm:$0xf]
      %v777 = vunpack.c.l.b16 %v745
      %v778 = vunpack.c.l.b16 %v746
      %v779 = vunpack.c.l.b16 %v747
      %v780 = vunpack.c.l.b16 %v748
      %v781 = vunpack.c.l.b16 %v749
      %v782 = vunpack.c.l.b16 %v750
      %v783 = vunpack.c.l.b16 %v751
      %v784 = vunpack.c.l.b16 %v752
      %v785 = vsel %vm604, %v778, %v777
      %v786 = vsel %vm606, %v779, %v785
      %v787 = vsel %vm608, %v780, %v786
      %v788 = vsel %vm610, %v781, %v787
      %v789 = vsel %vm612, %v782, %v788
      %v790 = vsel %vm614, %v783, %v789
      %v791 = vsel %vm616, %v784, %v790
      %v792 = vpack.c.b16 %v791, %v791
      %v810 = vunpack.c.l.b16 %v753
      %v811 = vunpack.c.l.b16 %v754
      %v812 = vunpack.c.l.b16 %v755
      %v813 = vunpack.c.l.b16 %v756
      %v814 = vunpack.c.l.b16 %v757
      %v815 = vunpack.c.l.b16 %v758
      %v816 = vunpack.c.l.b16 %v759
      %v817 = vunpack.c.l.b16 %v760
      %v818 = vunpack.c.l.b16 %v761
      %v819 = vunpack.c.l.b16 %v762
      %v820 = vunpack.c.l.b16 %v763
      %v821 = vunpack.c.l.b16 %v764
      %v822 = vunpack.c.l.b16 %v765
      %v823 = vunpack.c.l.b16 %v766
      %v824 = vunpack.c.l.b16 %v767
      %v825 = vunpack.c.l.b16 %v768
      %v826 = vpack.c.b16 %v811, %v810
      %v827 = vpack.c.b16 %v813, %v812
      %v828 = vpack.c.b16 %v815, %v814
      %v829 = vpack.c.b16 %v817, %v816
      %v830 = vpack.c.b16 %v819, %v818
      %v831 = vpack.c.b16 %v821, %v820
      %v832 = vpack.c.b16 %v823, %v822
      %v833 = vpack.c.b16 %v825, %v824
      %842 = vmatprep.subr.bf16.mxu0 0
      %843 = vmatpush1.bf16.msra.mxu0 %v826
      %844 = vmatprep.subr.bf16.mxu0 0
      %845 = vmatpush1.bf16.msra.mxu0 %v827
      %846 = vmatprep.subr.bf16.mxu0 0
      %847 = vmatpush1.bf16.msra.mxu0 %v828
      %848 = vmatprep.subr.bf16.mxu0 0
      %849 = vmatpush1.bf16.msra.mxu0 %v829
      %850 = vmatprep.subr.bf16.mxu0 0
      %851 = vmatpush1.bf16.msra.mxu0 %v830
      %852 = vmatprep.subr.bf16.mxu0 0
      %853 = vmatpush1.bf16.msra.mxu0 %v831
      %854 = vmatprep.subr.bf16.mxu0 0
      %855 = vmatpush1.bf16.msra.mxu0 %v832
      %856 = vmatprep.subr.bf16.mxu0 0
      %857 = vmatpush1.bf16.msra.mxu0 %v833
      %858 = vmatprep.subr.bf16.mxu0 0
      %859 = vmatpush1.bf16.msra.mxu0 0
      %860 = vmatprep.subr.bf16.mxu0 0
      %861 = vmatpush1.bf16.msra.mxu0 0
      %862 = vmatprep.subr.bf16.mxu0 0
      %863 = vmatpush1.bf16.msra.mxu0 0
      %864 = vmatprep.subr.bf16.mxu0 0
      %865 = vmatpush1.bf16.msra.mxu0 0
      %866 = vmatprep.subr.bf16.mxu0 0
      %867 = vmatpush1.bf16.msra.mxu0 0
      %868 = vmatprep.subr.bf16.mxu0 0
      %869 = vmatpush1.bf16.msra.mxu0 0
      %870 = vmatprep.subr.bf16.mxu0 0
      %871 = vmatpush1.bf16.msra.mxu0 0
      %872 = vmatprep.subr.bf16.mxu0 0
      %873 = vmatpush1.bf16.msra.mxu0 0
      %874 = vmatprep.mubr.bf16.mxu0 0
      %875 = vmatmul.mubr.bf16.gmra.mrb[0].mxu0 %v792
      %v876 = vpop.f32.mrb[0].mxu0
      %v877 = vadd.f32 0.0, %v876
      %v878 = vpop.f32.mrb[0].mxu0
      %v879 = vpop.f32.mrb[0].mxu0
      %v880 = vpop.f32.mrb[0].mxu0
      %881 = vdwg.mxu0
      %v882 = vadd.f32 %v744, %v877
      %v883 = vpack.c.bf16 %v882, %v882
      %v884 = vld [vmem:[%s5] sm:$0xff]
      %v885 = vld [vmem:[%s5 + $0x8] sm:$0xff]
      %v886 = vld [vmem:[%s5 + $0x10] sm:$0xff]
      %v887 = vld [vmem:[%s5 + $0x18] sm:$0xff]
      %v888 = vld [vmem:[%s5 + $0x20] sm:$0xff]
      %v889 = vld [vmem:[%s5 + $0x28] sm:$0xff]
      %v890 = vld [vmem:[%s5 + $0x30] sm:$0xff]
      %v891 = vld [vmem:[%s5 + $0x38] sm:$0xff]
      %v892 = vld [vmem:[%s5 + $0x40] sm:$0xff]
      %v893 = vld [vmem:[%s5 + $0x48] sm:$0xff]
      %v894 = vld [vmem:[%s5 + $0x50] sm:$0xff]
      %v895 = vld [vmem:[%s5 + $0x58] sm:$0xff]
      %v896 = vld [vmem:[%s5 + $0x60] sm:$0xff]
      %v897 = vld [vmem:[%s5 + $0x68] sm:$0xff]
      %v898 = vld [vmem:[%s5 + $0x70] sm:$0xff]
      %v899 = vld [vmem:[%s5 + $0x78] sm:$0xff]
      %v916 = vunpack.c.l.b16 %v884
      %v917 = vunpack.c.h.b16 %v884
      %v918 = vunpack.c.l.b16 %v885
      %v919 = vunpack.c.h.b16 %v885
      %v920 = vunpack.c.l.b16 %v886
      %v921 = vunpack.c.h.b16 %v886
      %v922 = vunpack.c.l.b16 %v887
      %v923 = vunpack.c.h.b16 %v887
      %v924 = vunpack.c.l.b16 %v888
      %v925 = vunpack.c.h.b16 %v888
      %v926 = vunpack.c.l.b16 %v889
      %v927 = vunpack.c.h.b16 %v889
      %v928 = vunpack.c.l.b16 %v890
      %v929 = vunpack.c.h.b16 %v890
      %v930 = vunpack.c.l.b16 %v891
      %v931 = vunpack.c.h.b16 %v891
      %v932 = vunpack.c.l.b16 %v892
      %v933 = vunpack.c.h.b16 %v892
      %v934 = vunpack.c.l.b16 %v893
      %v935 = vunpack.c.h.b16 %v893
      %v936 = vunpack.c.l.b16 %v894
      %v937 = vunpack.c.h.b16 %v894
      %v938 = vunpack.c.l.b16 %v895
      %v939 = vunpack.c.h.b16 %v895
      %v940 = vunpack.c.l.b16 %v896
      %v941 = vunpack.c.h.b16 %v896
      %v942 = vunpack.c.l.b16 %v897
      %v943 = vunpack.c.h.b16 %v897
      %v944 = vunpack.c.l.b16 %v898
      %v945 = vunpack.c.h.b16 %v898
      %v946 = vunpack.c.l.b16 %v899
      %v947 = vunpack.c.h.b16 %v899
      %v948 = vpack.c.b16 %v918, %v916
      %v949 = vpack.c.b16 %v919, %v917
      %v950 = vpack.c.b16 %v922, %v920
      %v951 = vpack.c.b16 %v923, %v921
      %v952 = vpack.c.b16 %v926, %v924
      %v953 = vpack.c.b16 %v927, %v925
      %v954 = vpack.c.b16 %v930, %v928
      %v955 = vpack.c.b16 %v931, %v929
      %v956 = vpack.c.b16 %v934, %v932
      %v957 = vpack.c.b16 %v935, %v933
      %v958 = vpack.c.b16 %v938, %v936
      %v959 = vpack.c.b16 %v939, %v937
      %v960 = vpack.c.b16 %v942, %v940
      %v961 = vpack.c.b16 %v943, %v941
      %v962 = vpack.c.b16 %v946, %v944
      %v963 = vpack.c.b16 %v947, %v945
      %980 = vmatprep.subr.bf16.mxu0 %v949
      %981 = vmatpush1.bf16.msra.mxu0 %v948
      %982 = vmatprep.subr.bf16.mxu0 %v951
      %983 = vmatpush1.bf16.msra.mxu0 %v950
      %984 = vmatprep.subr.bf16.mxu0 %v953
      %985 = vmatpush1.bf16.msra.mxu0 %v952
      %986 = vmatprep.subr.bf16.mxu0 %v955
      %987 = vmatpush1.bf16.msra.mxu0 %v954
      %988 = vmatprep.subr.bf16.mxu0 %v957
      %989 = vmatpush1.bf16.msra.mxu0 %v956
      %990 = vmatprep.subr.bf16.mxu0 %v959
      %991 = vmatpush1.bf16.msra.mxu0 %v958
      %992 = vmatprep.subr.bf16.mxu0 %v961
      %993 = vmatpush1.bf16.msra.mxu0 %v960
      %994 = vmatprep.subr.bf16.mxu0 %v963
      %995 = vmatpush1.bf16.msra.mxu0 %v962
      %996 = vmatprep.subr.bf16.mxu0 0
      %997 = vmatpush1.bf16.msra.mxu0 0
      %998 = vmatprep.subr.bf16.mxu0 0
      %999 = vmatpush1.bf16.msra.mxu0 0
      %1000 = vmatprep.subr.bf16.mxu0 0
      %1001 = vmatpush1.bf16.msra.mxu0 0
      %1002 = vmatprep.subr.bf16.mxu0 0
      %1003 = vmatpush1.bf16.msra.mxu0 0
      %1004 = vmatprep.subr.bf16.mxu0 0
      %1005 = vmatpush1.bf16.msra.mxu0 0
      %1006 = vmatprep.subr.bf16.mxu0 0
      %1007 = vmatpush1.bf16.msra.mxu0 0
      %1008 = vmatprep.subr.bf16.mxu0 0
      %1009 = vmatpush1.bf16.msra.mxu0 0
      %1010 = vmatprep.subr.bf16.mxu0 0
      %1011 = vmatpush1.bf16.msra.mxu0 0
      %1012 = vmatprep.mubr.bf16.mxu0 0
      %1013 = vmatmul.mubr.bf16.gmra.mrb[0].mxu0 %v883
      %v1014 = vpop.f32.mrb[0].mxu0
      %v1015 = vadd.f32 0.0, %v1014
      %v1016 = vpop.f32.mrb[0].mxu0
      %v1017 = vadd.f32 0.0, %v1016
      %v1018 = vpop.f32.mrb[0].mxu0
      %v1019 = vpop.f32.mrb[0].mxu0
      %1020 = vdwg.mxu0
      %v1021 = vmax.f32 %v1015, 0.0
      %v1022 = vmax.f32 %v1017, 0.0
      %v1023 = vpack.c.bf16 %v1021, %v1021
      %v1024 = vpack.c.bf16 %v1022, %v1022
      %v1025 = vld [vmem:[%s6] sm:$0xf]
      %v1026 = vld [vmem:[%s6 + $0x4] sm:$0xf]
      %v1027 = vld [vmem:[%s6 + $0x8] sm:$0xf]
      %v1028 = vld [vmem:[%s6 + $0xc] sm:$0xf]
      %v1029 = vld [vmem:[%s6 + $0x10] sm:$0xf]
      %v1030 = vld [vmem:[%s6 + $0x14] sm:$0xf]
      %v1031 = vld [vmem:[%s6 + $0x18] sm:$0xf]
      %v1032 = vld [vmem:[%s6 + $0x1c] sm:$0xf]
      %v1033 = vld [vmem:[%s6 + $0x20] sm:$0xf]
      %v1034 = vld [vmem:[%s6 + $0x24] sm:$0xf]
      %v1035 = vld [vmem:[%s6 + $0x28] sm:$0xf]
      %v1036 = vld [vmem:[%s6 + $0x2c] sm:$0xf]
      %v1037 = vld [vmem:[%s6 + $0x30] sm:$0xf]
      %v1038 = vld [vmem:[%s6 + $0x34] sm:$0xf]
      %v1039 = vld [vmem:[%s6 + $0x38] sm:$0xf]
      %v1040 = vld [vmem:[%s6 + $0x3c] sm:$0xf]
      %v1041 = vld [vmem:[%s6 + $0x40] sm:$0xf]
      %v1042 = vld [vmem:[%s6 + $0x44] sm:$0xf]
      %v1043 = vld [vmem:[%s6 + $0x48] sm:$0xf]
      %v1044 = vld [vmem:[%s6 + $0x4c] sm:$0xf]
      %v1045 = vld [vmem:[%s6 + $0x50] sm:$0xf]
      %v1046 = vld [vmem:[%s6 + $0x54] sm:$0xf]
      %v1047 = vld [vmem:[%s6 + $0x58] sm:$0xf]
      %v1048 = vld [vmem:[%s6 + $0x5c] sm:$0xf]
      %v1049 = vld [vmem:[%s6 + $0x60] sm:$0xf]
      %v1050 = vld [vmem:[%s6 + $0x64] sm:$0xf]
      %v1051 = vld [vmem:[%s6 + $0x68] sm:$0xf]
      %v1052 = vld [vmem:[%s6 + $0x6c] sm:$0xf]
      %v1053 = vld [vmem:[%s6 + $0x70] sm:$0xf]
      %v1054 = vld [vmem:[%s6 + $0x74] sm:$0xf]
      %v1055 = vld [vmem:[%s6 + $0x78] sm:$0xf]
      %v1056 = vld [vmem:[%s6 + $0x7c] sm:$0xf]
      %v1089 = vunpack.c.l.b16 %v1025
      %v1090 = vunpack.c.l.b16 %v1026
      %v1091 = vunpack.c.l.b16 %v1027
      %v1092 = vunpack.c.l.b16 %v1028
      %v1093 = vunpack.c.l.b16 %v1029
      %v1094 = vunpack.c.l.b16 %v1030
      %v1095 = vunpack.c.l.b16 %v1031
      %v1096 = vunpack.c.l.b16 %v1032
      %v1097 = vunpack.c.l.b16 %v1033
      %v1098 = vunpack.c.l.b16 %v1034
      %v1099 = vunpack.c.l.b16 %v1035
      %v1100 = vunpack.c.l.b16 %v1036
      %v1101 = vunpack.c.l.b16 %v1037
      %v1102 = vunpack.c.l.b16 %v1038
      %v1103 = vunpack.c.l.b16 %v1039
      %v1104 = vunpack.c.l.b16 %v1040
      %v1105 = vunpack.c.l.b16 %v1041
      %v1106 = vunpack.c.l.b16 %v1042
      %v1107 = vunpack.c.l.b16 %v1043
      %v1108 = vunpack.c.l.b16 %v1044
      %v1109 = vunpack.c.l.b16 %v1045
      %v1110 = vunpack.c.l.b16 %v1046
      %v1111 = vunpack.c.l.b16 %v1047
      %v1112 = vunpack.c.l.b16 %v1048
      %v1113 = vunpack.c.l.b16 %v1049
      %v1114 = vunpack.c.l.b16 %v1050
      %v1115 = vunpack.c.l.b16 %v1051
      %v1116 = vunpack.c.l.b16 %v1052
      %v1117 = vunpack.c.l.b16 %v1053
      %v1118 = vunpack.c.l.b16 %v1054
      %v1119 = vunpack.c.l.b16 %v1055
      %v1120 = vunpack.c.l.b16 %v1056
      %v1121 = vpack.c.b16 %v1090, %v1089
      %v1122 = vpack.c.b16 %v1092, %v1091
      %v1123 = vpack.c.b16 %v1094, %v1093
      %v1124 = vpack.c.b16 %v1096, %v1095
      %v1125 = vpack.c.b16 %v1098, %v1097
      %v1126 = vpack.c.b16 %v1100, %v1099
      %v1127 = vpack.c.b16 %v1102, %v1101
      %v1128 = vpack.c.b16 %v1104, %v1103
      %v1129 = vpack.c.b16 %v1106, %v1105
      %v1130 = vpack.c.b16 %v1108, %v1107
      %v1131 = vpack.c.b16 %v1110, %v1109
      %v1132 = vpack.c.b16 %v1112, %v1111
      %v1133 = vpack.c.b16 %v1114, %v1113
      %v1134 = vpack.c.b16 %v1116, %v1115
      %v1135 = vpack.c.b16 %v1118, %v1117
      %v1136 = vpack.c.b16 %v1120, %v1119
      %1153 = vmatprep.subr.bf16.mxu0 0
      %1154 = vmatpush1.bf16.msra.mxu0 %v1121
      %1155 = vmatprep.subr.bf16.mxu0 0
      %1156 = vmatpush1.bf16.msra.mxu0 %v1122
      %1157 = vmatprep.subr.bf16.mxu0 0
      %1158 = vmatpush1.bf16.msra.mxu0 %v1123
      %1159 = vmatprep.subr.bf16.mxu0 0
      %1160 = vmatpush1.bf16.msra.mxu0 %v1124
      %1161 = vmatprep.subr.bf16.mxu0 0
      %1162 = vmatpush1.bf16.msra.mxu0 %v1125
      %1163 = vmatprep.subr.bf16.mxu0 0
      %1164 = vmatpush1.bf16.msra.mxu0 %v1126
      %1165 = vmatprep.subr.bf16.mxu0 0
      %1166 = vmatpush1.bf16.msra.mxu0 %v1127
      %1167 = vmatprep.subr.bf16.mxu0 0
      %1168 = vmatpush1.bf16.msra.mxu0 %v1128
      %1169 = vmatprep.subr.bf16.mxu0 0
      %1170 = vmatpush1.bf16.msra.mxu0 %v1129
      %1171 = vmatprep.subr.bf16.mxu0 0
      %1172 = vmatpush1.bf16.msra.mxu0 %v1130
      %1173 = vmatprep.subr.bf16.mxu0 0
      %1174 = vmatpush1.bf16.msra.mxu0 %v1131
      %1175 = vmatprep.subr.bf16.mxu0 0
      %1176 = vmatpush1.bf16.msra.mxu0 %v1132
      %1177 = vmatprep.subr.bf16.mxu0 0
      %1178 = vmatpush1.bf16.msra.mxu0 %v1133
      %1179 = vmatprep.subr.bf16.mxu0 0
      %1180 = vmatpush1.bf16.msra.mxu0 %v1134
      %1181 = vmatprep.subr.bf16.mxu0 0
      %1182 = vmatpush1.bf16.msra.mxu0 %v1135
      %1183 = vmatprep.subr.bf16.mxu0 0
      %1184 = vmatpush1.bf16.msra.mxu0 %v1136
      %1185 = vmatprep.mubr.bf16.mxu0 %v1024
      %1186 = vmatmul.mubr.bf16.gmra.mrb[0].mxu0 %v1023
      %v1187 = vpop.f32.mrb[0].mxu0
      %v1188 = vadd.f32 0.0, %v1187
      %v1189 = vpop.f32.mrb[0].mxu0
      %v1190 = vpop.f32.mrb[0].mxu0
      %v1191 = vpop.f32.mrb[0].mxu0
      %1192 = vdwg.mxu0
      %v1193 = vadd.f32 %v882, %v1188
      %1194 = vst [vmem:[%s312] sm:$0xff] %v1193
      %p1195 = scmp.lt.s32.totalorder %s18, 7
      %s1196 = scalar_select %p1195, %s18, 7
      %s1197 = smul.addr %s1196, 8
      %s1198 = scalar_lea.vmem %s7, %s1197
      // Predicated region
      $region49: #{tour_embedding_forward.1} parent=47 // pred_check
        %p1199 = pneg %p198
      $region50: #{tour_embedding_forward.1} parent=47 // pred_check_branch
        %1201 = sbr.rel (%p1199) target = $region52
      $region51: #{tour_embedding_forward.1} parent=47 // pred_region
        _
      $region52: #{tour_embedding_forward.1} parent=47 // pred_fallthru
        _
    $region48: #{tour_embedding_forward.1} parent=5 // pred_fallthru
      _
    %p1202 = scmp.le.s32.totalorder 2, %s13
    // Predicated region
    $region53: #{tour_embedding_forward.1} parent=5 // pred_check
      %p1203 = pneg %p1202
    $region54: #{tour_embedding_forward.1} parent=5 // pred_check_branch
      %1205 = sbr.rel (%p1203) target = $region56
    $region55: #{tour_embedding_forward.1} parent=5 // pred_region
      %s1206 = ssub.s32 %s13, 2
      // Predicated region
      $region57: #{tour_embedding_forward.1} parent=55 // pred_check
        %p1207 = pneg %p204
      $region58: #{tour_embedding_forward.1} parent=55 // pred_check_branch
        %1209 = sbr.rel (%p1207) target = $region60
      $region59: #{tour_embedding_forward.1} parent=55 // pred_region
        %p1210 = scmp.lt.s32.totalorder %s19, 7
        %s1211 = scalar_select %p1210, %s19, 7
        %s1212 = smul.addr %s1211, 8
        %s1213 = scalar_lea.vmem %s7, %s1212
      $region60: #{tour_embedding_forward.1} parent=55 // pred_fallthru
        _
    $region56: #{tour_embedding_forward.1} parent=5 // pred_fallthru
      _
  $region6: #{tour_embedding_forward.1} parent=0 // loop_footer
    %s17 = sadd.s32 1, %s13
  $region7: #{tour_embedding_forward.1} parent=0 // loop_footer_branch
    %12 = sbr.rel target = $region3
  $region8: #{tour_embedding_forward.1} parent=0 // loop_exit
    _

</llo_original>
